<compile_context>
chip_gen: v5e
topology: v5e:2x2
jax: 0.10.0
libtpu: 0.0.40
codegen_flags: <defaults>
</compile_context>

<pallas_src>
import functools

import jax
import jax.numpy as jnp
from jax.experimental import pallas as pl
from jax.experimental.pallas import tpu as pltpu


# ---- packed-parameter slab layout (f32, every row 128 lanes wide) ----------
# rows   0:  4 -> W1 (4,128)           real data [0:4, 0:64]   (rows 4:8 pad)
# rows   8:  9 -> b1 (1,128)           real data [:,  0:64]
# rows  16:144 -> W2 (128,128)         real data [0:64, 0:64]
# rows 144:145 -> b2 (1,128)           real data [:,  0:64]
# rows 152:280 -> W3 (128,128)         real data [0:64, 0:2]
# rows 280:281 -> b3 (1,128)           real data [:,  0:2]
# (all slice starts are multiples of 8 -> sublane-aligned static slices)
PROWS = 288
PCOLS = 128
IN_W = 4     # cartpole observation dim
OUT_W = 2    # action logits


def tinynet_kernel(x_ref, p_ref, o_ref):
    # x tile streams per grid step; p_ref (packed weights) has a constant
    # index_map so it is fetched once and stays resident in VMEM.
    x = x_ref[...]                      # (TB, 4)
    w1 = p_ref[0:4, :]                  # (4, 128)   cols 64:128 zero
    b1 = p_ref[8:9, :]                  # (1, 128)
    w2 = p_ref[16:144, :]               # (128, 128)
    b2 = p_ref[144:145, :]              # (1, 128)
    w3 = p_ref[152:280, :]              # (128, 128) cols 2:128 zero
    b3 = p_ref[280:281, :]              # (1, 128)

    h1 = jnp.maximum(jnp.dot(x, w1, preferred_element_type=jnp.float32) + b1, 0.0)
    h2 = jnp.maximum(jnp.dot(h1, w2, preferred_element_type=jnp.float32) + b2, 0.0)
    out = jnp.dot(h2, w3, preferred_element_type=jnp.float32) + b3   # (TB, 128)
    # Only the first 2 lanes are real logits; the narrow store cuts HBM
    # writeback 64x vs a 128-wide slab (masked vst.msk, same store count).
    o_ref[...] = out[:, :OUT_W].astype(o_ref.dtype)


def _pick_tb(batch, tb_max=1024):
    """Largest batch tile up to tb_max, but keep >= 2 grid tiles whenever the
    batch allows, so the 'parallel' axis can feed both TensorCores on v7x."""
    if batch <= 8:
        return 8
    half = (batch + 1) // 2
    return min(tb_max, ((half + 7) // 8) * 8)


@functools.partial(jax.jit, static_argnames=("tb",))
def _tinynet_forward(x, packed_params, *, tb):
    B = x.shape[0]
    n_tiles = pl.cdiv(B, tb)
    return pl.pallas_call(
        tinynet_kernel,
        out_shape=jax.ShapeDtypeStruct((B, OUT_W), jnp.float32),
        grid=(n_tiles,),
        in_specs=[
            # Streamed x tile at native width 4 (full last dim -> legal block);
            # ragged final tile handled by the grid (OOB rows never stored).
            pl.BlockSpec((tb, IN_W), lambda i: (i, 0)),
            # Weight-stationary packed slab, constant index map.
            pl.BlockSpec((PROWS, PCOLS), lambda i: (0, 0)),
        ],
        out_specs=pl.BlockSpec((tb, OUT_W), lambda i: (i, 0)),
        compiler_params=pltpu.CompilerParams(
            dimension_semantics=("parallel",)),   # v7x: shard batch over 2 TCs
    )(x, packed_params)


def tinynet_forward(x, packed_params, *, tb=None):
    """x: (B, 4), packed_params: (PROWS, PCOLS) f32 -> logits (B, 2) f32."""
    x = x.astype(jnp.float32)
    if tb is None:
        tb = _pick_tb(x.shape[0])
    return _tinynet_forward(x, packed_params, tb=tb)


def init_params(key):
    """Deterministic init mimicking torch.nn.Linear default U[-1/sqrt(fan_in), +]."""
    def linear(k, fan_in, fan_out):
        kw, kb = jax.random.split(k)
        bound = 1.0 / jnp.sqrt(float(fan_in))
        w = jax.random.uniform(kw, (fan_in, fan_out), jnp.float32, -bound, bound)
        b = jax.random.uniform(kb, (fan_out,), jnp.float32, -bound, bound)
        return w, b

    k1, k2, k3 = jax.random.split(key, 3)
    w1, b1 = linear(k1, 4, 64)
    w2, b2 = linear(k2, 64, 64)
    w3, b3 = linear(k3, 64, 2)
    return (w1, b1, w2, b2, w3, b3)


def pack_params(params):
    """Pack all 6 parameter tensors into one lane-dense (PROWS, PCOLS) f32 slab."""
    w1, b1, w2, b2, w3, b3 = params
    slab = jnp.zeros((PROWS, PCOLS), jnp.float32)
    slab = slab.at[0:4, 0:64].set(w1)
    slab = slab.at[8, 0:64].set(b1)
    slab = slab.at[16:80, 0:64].set(w2)
    slab = slab.at[144, 0:64].set(b2)
    slab = slab.at[152:216, 0:2].set(w3)
    slab = slab.at[280, 0:2].set(b3)
    return slab


if __name__ == "__main__":
    key = jax.random.PRNGKey(0)
    kx, kp = jax.random.split(key)

    params = init_params(kp)
    packed = pack_params(params)
    w1, b1, w2, b2, w3, b3 = params

    def ref_forward(x):
        hp = jax.lax.Precision.HIGHEST
        h = jnp.maximum(jnp.dot(x, w1, precision=hp) + b1, 0.0)
        h = jnp.maximum(jnp.dot(h, w2, precision=hp) + b2, 0.0)
        return jnp.dot(h, w3, precision=hp) + b3

    # B=200 exercises the 2-tile megacore path + a ragged last tile;
    # B=5 exercises the single-boundary-tile path (tile larger than batch).
    for B in (200, 5):
        x = jax.random.normal(jax.random.fold_in(kx, B), (B, 4), jnp.float32)
        out = jax.block_until_ready(tinynet_forward(x, packed))
        ref = ref_forward(x)
        assert out.shape == (B, 2)
        assert jnp.allclose(out, ref, atol=1e-4), f"mismatch vs reference (B={B})"

    print("KERNEL_OK")
</pallas_src>

<mosaic_0001>
module attributes {stable_mosaic.version = 11 : i64} {
  func.func @tinynet_kernel(%arg0: i32, %arg1: memref<104x4xf32, #tpu.memory_space<vmem>>, %arg2: memref<288x128xf32, #tpu.memory_space<vmem>>, %arg3: memref<104x2xf32, #tpu.memory_space<vmem>>) attributes {dimension_semantics = [#tpu.dimension_semantics<parallel>], iteration_bounds = array<i64: 2>, scalar_prefetch = 0 : i64, scratch_operands = 0 : i64, tpu.core_type = #tpu.core_type<tc>, window_params = [{transform_indices = @transform_0, window_bounds = array<i64: 104, 4>}, {pipeline_mode = #tpu.pipeline_mode<synchronous>, transform_indices = @transform_1, window_bounds = array<i64: 288, 128>}, {transform_indices = @transform_2, window_bounds = array<i64: 104, 2>}]} {
    %c0 = arith.constant 0 : index
    %c0_0 = arith.constant 0 : index
    %0 = vector.load %arg1[%c0, %c0_0] : memref<104x4xf32, #tpu.memory_space<vmem>>, vector<104x4xf32>
    %c0_1 = arith.constant 0 : index
    %c0_2 = arith.constant 0 : index
    %1 = vector.load %arg2[%c0_1, %c0_2] : memref<288x128xf32, #tpu.memory_space<vmem>>, vector<4x128xf32>
    %c8 = arith.constant 8 : index
    %c0_3 = arith.constant 0 : index
    %2 = vector.load %arg2[%c8, %c0_3] : memref<288x128xf32, #tpu.memory_space<vmem>>, vector<1x128xf32>
    %c16 = arith.constant 16 : index
    %c0_4 = arith.constant 0 : index
    %3 = vector.load %arg2[%c16, %c0_4] : memref<288x128xf32, #tpu.memory_space<vmem>>, vector<128x128xf32>
    %c144 = arith.constant 144 : index
    %c0_5 = arith.constant 0 : index
    %4 = vector.load %arg2[%c144, %c0_5] : memref<288x128xf32, #tpu.memory_space<vmem>>, vector<1x128xf32>
    %c152 = arith.constant 152 : index
    %c0_6 = arith.constant 0 : index
    %5 = vector.load %arg2[%c152, %c0_6] : memref<288x128xf32, #tpu.memory_space<vmem>>, vector<128x128xf32>
    %c280 = arith.constant 280 : index
    %c0_7 = arith.constant 0 : index
    %6 = vector.load %arg2[%c280, %c0_7] : memref<288x128xf32, #tpu.memory_space<vmem>>, vector<1x128xf32>
    %cst = arith.constant dense<0.000000e+00> : vector<104x128xf32>
    %7 = tpu.matmul %0, %1, %cst {dimension_numbers = #tpu.dot_dimension_numbers<[1], [0], [0], [1], [0, 0, 1, 1], [], []>} : vector<104x4xf32>, vector<4x128xf32>, vector<104x128xf32> -> vector<104x128xf32>
    %8 = vector.broadcast %2 : vector<1x128xf32> to vector<104x128xf32>
    %9 = arith.addf %7, %8 : vector<104x128xf32>
    %cst_8 = arith.constant 0.000000e+00 : f32
    %10 = vector.broadcast %cst_8 : f32 to vector<104x128xf32>
    %11 = arith.maximumf %9, %10 : vector<104x128xf32>
    %cst_9 = arith.constant dense<0.000000e+00> : vector<104x128xf32>
    %12 = tpu.matmul %11, %3, %cst_9 {dimension_numbers = #tpu.dot_dimension_numbers<[1], [0], [0], [1], [0, 0, 1, 1], [], []>} : vector<104x128xf32>, vector<128x128xf32>, vector<104x128xf32> -> vector<104x128xf32>
    %13 = vector.broadcast %4 : vector<1x128xf32> to vector<104x128xf32>
    %14 = arith.addf %12, %13 : vector<104x128xf32>
    %cst_10 = arith.constant 0.000000e+00 : f32
    %15 = vector.broadcast %cst_10 : f32 to vector<104x128xf32>
    %16 = arith.maximumf %14, %15 : vector<104x128xf32>
    %cst_11 = arith.constant dense<0.000000e+00> : vector<104x128xf32>
    %17 = tpu.matmul %16, %5, %cst_11 {dimension_numbers = #tpu.dot_dimension_numbers<[1], [0], [0], [1], [0, 0, 1, 1], [], []>} : vector<104x128xf32>, vector<128x128xf32>, vector<104x128xf32> -> vector<104x128xf32>
    %18 = vector.broadcast %6 : vector<1x128xf32> to vector<104x128xf32>
    %19 = arith.addf %17, %18 : vector<104x128xf32>
    %20 = vector.extract_strided_slice %19 {offsets = [0, 0], sizes = [104, 2], strides = [1, 1]} : vector<104x128xf32> to vector<104x2xf32>
    %c0_12 = arith.constant 0 : index
    %c0_13 = arith.constant 0 : index
    %21 = vector.load %arg3[%c0_12, %c0_13] : memref<104x2xf32, #tpu.memory_space<vmem>>, vector<104x2xf32>
    tpu.vector_store %arg3[%c0_12, %c0_13], %20 {strides = array<i32>} : memref<104x2xf32, #tpu.memory_space<vmem>>, vector<104x2xf32>,
    return
  }
  func.func @transform_0(%arg0: i32) -> (i32, i32) {
    %c0_i32 = arith.constant 0 : i32
    %c0_i32_0 = arith.constant 0 : i32
    return %arg0, %c0_i32 : i32, i32
  }
  func.func @transform_1(%arg0: i32) -> (i32, i32) {
    %c0_i32 = arith.constant 0 : i32
    %c0_i32_0 = arith.constant 0 : i32
    %c0_i32_1 = arith.constant 0 : i32
    return %c0_i32, %c0_i32_0 : i32, i32
  }
  func.func @transform_2(%arg0: i32) -> (i32, i32) {
    %c0_i32 = arith.constant 0 : i32
    %c0_i32_0 = arith.constant 0 : i32
    return %arg0, %c0_i32 : i32, i32
  }
}

</mosaic_0001>

<llo_original>
// kernel: _tinynet_forward.1
$region0: #{_tinynet_forward.1}
  #allocation0 [shape = 'u32[]', space=smem, size = 0x4, offset = 0x4, fixed_abs, tag = 'smem constant byte address 0x4 - core index']
  #allocation1 [shape = 'u32[72,128]{1,0:T(1,128)}', space=vmem, size = 0x9000, scoped, tag = 'internal scratch']
  %s0 = inlined_call_operand.vmem [shape: f32[200,4], index: 0, kind: input, shape index: {}]
  %s1 = inlined_call_operand.hbm [shape: f32[288,128], index: 1, kind: input, shape index: {}]
  %s2 = inlined_call_operand.vmem [shape: f32[200,2], index: 2, kind: output, shape index: {}]
  %s3 = sld [smem:[#allocation0]]
  $region93: #{_tinynet_forward.1} parent=0
    _
  %s5 = ssub.s32 1, %s3
  %s6 = scalar_select 0, %s5, %s3
  $region1: #{_tinynet_forward.1} parent=0
    #allocation2 [shape = 'u8[147456]{0}', space=vmem, size = 0x24000, scoped, tag = 'input window, operand 1, single buffered']
    #allocation3 [shape = 's32[2]{0}', space=sflag, size = 0x8, scoped, tag = 'scoped memory for _tinynet_forward.1']
    #allocation4 [shape = 'u8[106496]{0}', space=vmem, size = 0x1a000, scoped, tag = 'output window, operand 0']
    %7 = vsyncpa [#allocation3], 0
    loop: start=0, step=1, limit=4
    $region2: #{_tinynet_forward.1} parent=1 // loop_pre_header
      _
    $region3: #{_tinynet_forward.1} parent=1 // loop_header
      %s9 = sphi 0, %s13
      %p10 = scmp.ge.s32.totalorder %s9, 4
      %s19 = sphi 0, %s21
      %s22 = sphi 0, %s19
      %s23 = sphi 0, %s22
      %s39 = sphi 0, %s23
      %s43 = sphi 0, %s43
      %s45 = sphi 0, %s43
      %s46 = sphi 0, %s45
      %s60 = sphi 0, %s46
      %s66 = sphi 0, %s68
      %s69 = sphi 0, %s66
      %s70 = sphi 0, %s69
      %s86 = sphi 0, %s70
    $region4: #{_tinynet_forward.1} parent=1 // loop_header_branch
      %12 = sbr.rel (%p10) target = $region8
    $region5: #{_tinynet_forward.1} parent=1 // loop_body
      %s14 = ssub.s32 %s9, 1
      %s15 = ssub.s32 %s9, 2
      %s16 = sadd.s32 %s9, 1
      %s17 = ssub.s32 %s9, %s16
      %p18 = scmp.eq.s32.totalorder %s17, 0
      %s20 = sadd.s32 %s19, 1
      %s21 = scalar_select %p18, %s19, %s20
      %p24 = pneg %p18
      %p25 = scmp.eq.s32.totalorder %s9, 1
      %p26 = por %p24, %p25
      %p27 = scmp.ne.s32.totalorder %s19, %s22
      %p28 = scmp.eq.s32.totalorder %s9, 0
      %p29 = por %p27, %p28
      %p30 = scmp.ne.s32.totalorder %s19, %s22
      %p31 = scmp.eq.s32.totalorder %s14, 1
      %p32 = por %p30, %p31
      %p33 = scmp.ne.s32.totalorder %s22, %s23
      %p34 = scmp.eq.s32.totalorder %s14, 0
      %p35 = por %p33, %p34
      %p36 = scmp.ne.s32.totalorder %s22, %s23
      %p37 = scmp.eq.s32.totalorder %s15, 1
      %p38 = por %p36, %p37
      %p40 = scmp.ne.s32.totalorder %s23, %s39
      %p41 = scmp.eq.s32.totalorder %s15, 0
      %p42 = por %p40, %p41
      %s44 = sadd.s32 %s43, 1
      %p47 = scmp.eq.s32.totalorder %s9, 1
      %p48 = scmp.ne.s32.totalorder %s43, %s45
      %p49 = scmp.eq.s32.totalorder %s9, 0
      %p50 = por %p48, %p49
      %p51 = scmp.ne.s32.totalorder %s43, %s45
      %p52 = scmp.eq.s32.totalorder %s14, 1
      %p53 = por %p51, %p52
      %p54 = scmp.ne.s32.totalorder %s45, %s46
      %p55 = scmp.eq.s32.totalorder %s14, 0
      %p56 = por %p54, %p55
      %p57 = scmp.ne.s32.totalorder %s45, %s46
      %p58 = scmp.eq.s32.totalorder %s15, 1
      %p59 = por %p57, %p58
      %p61 = scmp.ne.s32.totalorder %s46, %s60
      %p62 = scmp.eq.s32.totalorder %s15, 0
      %p63 = por %p61, %p62
      %s64 = ssub.s32 %s9, %s16
      %p65 = scmp.eq.s32.totalorder %s64, 0
      %s67 = sadd.s32 %s66, 1
      %s68 = scalar_select %p65, %s66, %s67
      %p71 = pneg %p65
      %p72 = scmp.eq.s32.totalorder %s9, 1
      %p73 = por %p71, %p72
      %p74 = scmp.ne.s32.totalorder %s66, %s69
      %p75 = scmp.eq.s32.totalorder %s9, 0
      %p76 = por %p74, %p75
      %p77 = scmp.ne.s32.totalorder %s66, %s69
      %p78 = scmp.eq.s32.totalorder %s14, 1
      %p79 = por %p77, %p78
      %p80 = scmp.ne.s32.totalorder %s69, %s70
      %p81 = scmp.eq.s32.totalorder %s14, 0
      %p82 = por %p80, %p81
      %p83 = scmp.ne.s32.totalorder %s69, %s70
      %p84 = scmp.eq.s32.totalorder %s15, 1
      %p85 = por %p83, %p84
      %p87 = scmp.ne.s32.totalorder %s70, %s86
      %p88 = scmp.eq.s32.totalorder %s15, 0
      %p89 = por %p87, %p88
      %p90 = scmp.le.s32.totalorder 1, %s9
      %p91 = scmp.lt.s32.totalorder %s9, 3
      %p92 = pnand %p90, %p91
      %p93 = pneg %p92
      // Predicated region
      $region9: #{_tinynet_forward.1} parent=5 // pred_check
        _
      $region10: #{_tinynet_forward.1} parent=5 // pred_check_branch
        %95 = sbr.rel (%p92) target = $region12
      $region11: #{_tinynet_forward.1} parent=5 // pred_region
        %s96 = ssub.s32 %s9, 1
        // Predicated region
        $region13: #{_tinynet_forward.1} parent=11 // pred_check
          %p97 = pneg %p56
        $region14: #{_tinynet_forward.1} parent=11 // pred_check_branch
          %99 = sbr.rel (%p97) target = $region16
        $region15: #{_tinynet_forward.1} parent=11 // pred_region
          %101 = vsyncadd [#allocation3], 0
          %s102 = sshll.u32 %s1, 4
          %s103 = int_to_ptr.hbm [resolvable:$true] %s102
          %s104 = sshll.u32 [#allocation2], 4
          %s105 = int_to_ptr.vmem [resolvable:$true] %s104
          %110 = dma.hbm_to_vmem [thread:$0]  %s103, 4608, %s105, [#allocation3], 128, 128, 8
        $region16: #{_tinynet_forward.1} parent=11 // pred_fallthru
          _
      $region12: #{_tinynet_forward.1} parent=5 // pred_fallthru
        _
      %p111 = scmp.lt.s32.totalorder %s9, 2
      // Predicated region
      $region17: #{_tinynet_forward.1} parent=5 // pred_check
        %p112 = pneg %p111
      $region18: #{_tinynet_forward.1} parent=5 // pred_check_branch
        %114 = sbr.rel (%p112) target = $region20
      $region19: #{_tinynet_forward.1} parent=5 // pred_region
        // Predicated region
        $region21: #{_tinynet_forward.1} parent=19 // pred_check
          %p115 = pneg %p29
        $region22: #{_tinynet_forward.1} parent=19 // pred_check_branch
          %117 = sbr.rel (%p115) target = $region24
        $region23: #{_tinynet_forward.1} parent=19 // pred_region
          %s118 = smul.u32 13, %s9
          %s119 = ssub.s32 25, %s118
          %p120 = scmp.lt.s32.totalorder %s119, 13
          %s121 = scalar_select %p120, %s119, 13
          %s122 = smul.u32 8, %s121
          %p123 = scmp.lt.s32.totalorder %s118, 24
          %s124 = scalar_select %p123, %s118, 24
          %s125 = smul.addr %s124, 8
          %s126 = scalar_lea.vmem %s0, %s125
          %s127 = smul.u32 13, %s9
          %s128 = ssub.s32 25, %s127
          %p129 = scmp.lt.s32.totalorder %s128, 13
          %s130 = scalar_select %p129, %s128, 13
          %s131 = smul.u32 8, %s130
        $region24: #{_tinynet_forward.1} parent=19 // pred_fallthru
          _
      $region20: #{_tinynet_forward.1} parent=5 // pred_fallthru
        _
      %p132 = scmp.le.s32.totalorder 1, %s9
      %p133 = scmp.lt.s32.totalorder %s9, 3
      %p134 = pnand %p132, %p133
      %p135 = pneg %p134
      // Predicated region
      $region25: #{_tinynet_forward.1} parent=5 // pred_check
        _
      $region26: #{_tinynet_forward.1} parent=5 // pred_check_branch
        %137 = sbr.rel (%p134) target = $region28
      $region27: #{_tinynet_forward.1} parent=5 // pred_region
        %s138 = ssub.s32 %s9, 1
        // Predicated region
        $region29: #{_tinynet_forward.1} parent=27 // pred_check
          %p139 = pneg %p56
        $region30: #{_tinynet_forward.1} parent=27 // pred_check_branch
          %141 = sbr.rel (%p139) target = $region32
        $region31: #{_tinynet_forward.1} parent=27 // pred_region
          %143 = dma.done [#allocation3], 4608
        $region32: #{_tinynet_forward.1} parent=27 // pred_fallthru
          _
        %s144 = smul.u32 13, %s14
        %s145 = ssub.s32 25, %s144
        %p146 = scmp.lt.s32.totalorder %s145, 13
        %s147 = scalar_select %p146, %s145, 13
        %s148 = smul.u32 8, %s147
        %p149 = scmp.lt.s32.totalorder %s144, 24
        %s150 = scalar_select %p149, %s144, 24
        %s151 = smul.addr %s150, 8
        %s152 = scalar_lea.vmem %s0, %s151
        %p153 = pneg %p35
        %p154 = pneg %p32
        %p155 = pneg %p56
        %p156 = pneg %p53
        %p157 = pneg %p82
        %p158 = pneg %p79
        %s159 = sand.u32 %s69, 1
        %s160 = sand.u32 %s69, 1
        %s161 = smul.addr %s160, 104
        %s162 = scalar_lea.vmem [#allocation4], %s161
        %s163 = smul.u32 13, %s14
        %s164 = ssub.s32 25, %s163
        %p165 = scmp.lt.s32.totalorder %s164, 13
        %s166 = scalar_select %p165, %s164, 13
        %s167 = smul.u32 8, %s166
        %p168 = scmp.lt.s32.totalorder %s163, 24
        %s169 = scalar_select %p168, %s163, 24
        %s170 = smul.addr %s169, 8
        %s171 = scalar_lea.vmem %s0, %s170
        %s172 = smul.u32 13, %s14
        %s173 = ssub.s32 25, %s172
        %p174 = scmp.lt.s32.totalorder %s173, 13
        %s175 = scalar_select %p174, %s173, 13
        %s176 = smul.u32 8, %s175
        %s177 = smul.u32 13, %s14
        %s178 = ssub.s32 25, %s177
        %p179 = scmp.lt.s32.totalorder %s178, 13
        %s180 = scalar_select %p179, %s178, 13
        %s181 = smul.u32 8, %s180
        %v182 = vld [vmem:[%s171] sm:$0xff]
        %v183 = vld [vmem:[%s171 + $0x8] sm:$0xff]
        %v184 = vld [vmem:[%s171 + $0x10] sm:$0xff]
        %v185 = vld [vmem:[%s171 + $0x18] sm:$0xff]
        %v186 = vld [vmem:[%s171 + $0x20] sm:$0xff]
        %v187 = vld [vmem:[%s171 + $0x28] sm:$0xff]
        %v188 = vld [vmem:[%s171 + $0x30] sm:$0xff]
        %v189 = vld [vmem:[%s171 + $0x38] sm:$0xff]
        %v190 = vld [vmem:[%s171 + $0x40] sm:$0xff]
        %v191 = vld [vmem:[%s171 + $0x48] sm:$0xff]
        %v192 = vld [vmem:[%s171 + $0x50] sm:$0xff]
        %v193 = vld [vmem:[%s171 + $0x58] sm:$0xff]
        %v194 = vld [vmem:[%s171 + $0x60] sm:$0xff]
        %v195 = vld [vmem:[#allocation2] sm:$0xf]
        %v196 = vld [vmem:[#allocation2 + $0x8] sm:$0x1]
        %v197 = vld [vmem:[#allocation2 + $0x10] sm:$0xff]
        %v198 = vld [vmem:[#allocation2 + $0x18] sm:$0xff]
        %v199 = vld [vmem:[#allocation2 + $0x20] sm:$0xff]
        %v200 = vld [vmem:[#allocation2 + $0x28] sm:$0xff]
        %v201 = vld [vmem:[#allocation2 + $0x30] sm:$0xff]
        %v202 = vld [vmem:[#allocation2 + $0x38] sm:$0xff]
        %v203 = vld [vmem:[#allocation2 + $0x40] sm:$0xff]
        %v204 = vld [vmem:[#allocation2 + $0x48] sm:$0xff]
        %v205 = vld [vmem:[#allocation2 + $0x50] sm:$0xff]
        %v206 = vld [vmem:[#allocation2 + $0x58] sm:$0xff]
        %v207 = vld [vmem:[#allocation2 + $0x60] sm:$0xff]
        %v208 = vld [vmem:[#allocation2 + $0x68] sm:$0xff]
        %v209 = vld [vmem:[#allocation2 + $0x70] sm:$0xff]
        %v210 = vld [vmem:[#allocation2 + $0x78] sm:$0xff]
        %v211 = vld [vmem:[#allocation2 + $0x80] sm:$0xff]
        %v212 = vld [vmem:[#allocation2 + $0x88] sm:$0xff]
        %v213 = vld [vmem:[#allocation2 + $0x90] sm:$0x1]
        %v214 = vld [vmem:[#allocation2 + $0x98] sm:$0xff]
        %v215 = vld [vmem:[#allocation2 + $0xa0] sm:$0xff]
        %v216 = vld [vmem:[#allocation2 + $0xa8] sm:$0xff]
        %v217 = vld [vmem:[#allocation2 + $0xb0] sm:$0xff]
        %v218 = vld [vmem:[#allocation2 + $0xb8] sm:$0xff]
        %v219 = vld [vmem:[#allocation2 + $0xc0] sm:$0xff]
        %v220 = vld [vmem:[#allocation2 + $0xc8] sm:$0xff]
        %v221 = vld [vmem:[#allocation2 + $0xd0] sm:$0xff]
        %v222 = vld [vmem:[#allocation2 + $0xd8] sm:$0xff]
        %v223 = vld [vmem:[#allocation2 + $0xe0] sm:$0xff]
        %v224 = vld [vmem:[#allocation2 + $0xe8] sm:$0xff]
        %v225 = vld [vmem:[#allocation2 + $0xf0] sm:$0xff]
        %v226 = vld [vmem:[#allocation2 + $0xf8] sm:$0xff]
        %v227 = vld [vmem:[#allocation2 + $0x100] sm:$0xff]
        %v228 = vld [vmem:[#allocation2 + $0x108] sm:$0xff]
        %v229 = vld [vmem:[#allocation2 + $0x110] sm:$0xff]
        %v230 = vld [vmem:[#allocation2 + $0x118] sm:$0x1]
        %v231 = vperm.slane %v196, 0
        %vm232 = vcmask 31744
        %v234 = vsel %vm232, %v182, 0
        %v237 = vsel %vm232, %v183, 0
        %v240 = vsel %vm232, %v184, 0
        %v243 = vsel %vm232, %v185, 0
        %v246 = vsel %vm232, %v186, 0
        %v249 = vsel %vm232, %v187, 0
        %v252 = vsel %vm232, %v188, 0
        %v255 = vsel %vm232, %v189, 0
        %v258 = vsel %vm232, %v190, 0
        %v261 = vsel %vm232, %v191, 0
        %v264 = vsel %vm232, %v192, 0
        %v267 = vsel %vm232, %v193, 0
        %v270 = vsel %vm232, %v194, 0
        %vm272 = vcmask 1043456
        %v274 = vsel %vm272, %v195, 0
        %276 = vmatpush.msra.mxu0 0.0
        %277 = vmatpush.msra.mxu0 0.0
        %278 = vmatpush.msra.mxu0 0.0
        %279 = vmatpush.msra.mxu0 0.0
        %280 = vmatpush.msra.mxu0 0.0
        %281 = vmatpush.msra.mxu0 0.0
        %282 = vmatpush.msra.mxu0 0.0
        %283 = vmatpush.msra.mxu0 0.0
        %284 = vmatpush.msra.mxu0 0.0
        %285 = vmatpush.msra.mxu0 0.0
        %286 = vmatpush.msra.mxu0 0.0
        %287 = vmatpush.msra.mxu0 0.0
        %288 = vmatpush.msra.mxu0 0.0
        %289 = vmatpush.msra.mxu0 0.0
        %290 = vmatpush.msra.mxu0 0.0
        %291 = vmatpush.msra.mxu0 %v274
        %292 = vmatmul.f32.gmra.mxu0 %v234
        %v293 = vpop.f32.mrf.mxu0
        %v294 = vadd.f32 %v231, %v293
        %295 = vmatmul.f32.gmra.mxu0 %v237
        %v296 = vpop.f32.mrf.mxu0
        %v297 = vadd.f32 %v231, %v296
        %298 = vmatmul.f32.gmra.mxu0 %v240
        %v299 = vpop.f32.mrf.mxu0
        %v300 = vadd.f32 %v231, %v299
        %301 = vmatmul.f32.gmra.mxu0 %v243
        %v302 = vpop.f32.mrf.mxu0
        %v303 = vadd.f32 %v231, %v302
        %304 = vmatmul.f32.gmra.mxu0 %v246
        %v305 = vpop.f32.mrf.mxu0
        %v306 = vadd.f32 %v231, %v305
        %307 = vmatmul.f32.gmra.mxu0 %v249
        %v308 = vpop.f32.mrf.mxu0
        %v309 = vadd.f32 %v231, %v308
        %310 = vmatmul.f32.gmra.mxu0 %v252
        %v311 = vpop.f32.mrf.mxu0
        %v312 = vadd.f32 %v231, %v311
        %313 = vmatmul.f32.gmra.mxu0 %v255
        %v314 = vpop.f32.mrf.mxu0
        %v315 = vadd.f32 %v231, %v314
        %316 = vmatmul.f32.gmra.mxu0 %v258
        %v317 = vpop.f32.mrf.mxu0
        %v318 = vadd.f32 %v231, %v317
        %319 = vmatmul.f32.gmra.mxu0 %v261
        %v320 = vpop.f32.mrf.mxu0
        %v321 = vadd.f32 %v231, %v320
        %322 = vmatmul.f32.gmra.mxu0 %v264
        %v323 = vpop.f32.mrf.mxu0
        %v324 = vadd.f32 %v231, %v323
        %325 = vmatmul.f32.gmra.mxu0 %v267
        %v326 = vpop.f32.mrf.mxu0
        %v327 = vadd.f32 %v231, %v326
        %328 = vmatmul.f32.gmra.mxu0 %v270
        %v329 = vpop.f32.mrf.mxu0
        %v330 = vadd.f32 %v231, %v329
        %331 = vdwg.mxu0
        %v332 = vmax.f32 %v294, 0.0
        %v333 = vmax.f32 %v297, 0.0
        %v334 = vmax.f32 %v300, 0.0
        %v335 = vmax.f32 %v303, 0.0
        %v336 = vmax.f32 %v306, 0.0
        %v337 = vmax.f32 %v309, 0.0
        %v338 = vmax.f32 %v312, 0.0
        %v339 = vmax.f32 %v315, 0.0
        %v340 = vmax.f32 %v318, 0.0
        %v341 = vmax.f32 %v321, 0.0
        %v342 = vmax.f32 %v324, 0.0
        %v343 = vmax.f32 %v327, 0.0
        %v344 = vmax.f32 %v330, 0.0
        %v345 = vperm.slane %v213, 0
        %346 = vmatpush.msra.mxu0 %v212
        %347 = vmatpush.msra.mxu0 %v211
        %348 = vmatpush.msra.mxu0 %v210
        %349 = vmatpush.msra.mxu0 %v209
        %350 = vmatpush.msra.mxu0 %v208
        %351 = vmatpush.msra.mxu0 %v207
        %352 = vmatpush.msra.mxu0 %v206
        %353 = vmatpush.msra.mxu0 %v205
        %354 = vmatpush.msra.mxu0 %v204
        %355 = vmatpush.msra.mxu0 %v203
        %356 = vmatpush.msra.mxu0 %v202
        %357 = vmatpush.msra.mxu0 %v201
        %358 = vmatpush.msra.mxu0 %v200
        %359 = vmatpush.msra.mxu0 %v199
        %360 = vmatpush.msra.mxu0 %v198
        %361 = vmatpush.msra.mxu0 %v197
        %362 = vmatmul.f32.gmra.mxu0 %v332
        %v363 = vpop.f32.mrf.mxu0
        %v364 = vadd.f32 %v345, %v363
        %365 = vmatmul.f32.gmra.mxu0 %v333
        %v366 = vpop.f32.mrf.mxu0
        %v367 = vadd.f32 %v345, %v366
        %368 = vmatmul.f32.gmra.mxu0 %v334
        %v369 = vpop.f32.mrf.mxu0
        %v370 = vadd.f32 %v345, %v369
        %371 = vmatmul.f32.gmra.mxu0 %v335
        %v372 = vpop.f32.mrf.mxu0
        %v373 = vadd.f32 %v345, %v372
        %374 = vmatmul.f32.gmra.mxu0 %v336
        %v375 = vpop.f32.mrf.mxu0
        %v376 = vadd.f32 %v345, %v375
        %377 = vmatmul.f32.gmra.mxu0 %v337
        %v378 = vpop.f32.mrf.mxu0
        %v379 = vadd.f32 %v345, %v378
        %380 = vmatmul.f32.gmra.mxu0 %v338
        %v381 = vpop.f32.mrf.mxu0
        %v382 = vadd.f32 %v345, %v381
        %383 = vmatmul.f32.gmra.mxu0 %v339
        %v384 = vpop.f32.mrf.mxu0
        %v385 = vadd.f32 %v345, %v384
        %386 = vmatmul.f32.gmra.mxu0 %v340
        %v387 = vpop.f32.mrf.mxu0
        %v388 = vadd.f32 %v345, %v387
        %389 = vmatmul.f32.gmra.mxu0 %v341
        %v390 = vpop.f32.mrf.mxu0
        %v391 = vadd.f32 %v345, %v390
        %392 = vmatmul.f32.gmra.mxu0 %v342
        %v393 = vpop.f32.mrf.mxu0
        %v394 = vadd.f32 %v345, %v393
        %395 = vmatmul.f32.gmra.mxu0 %v343
        %v396 = vpop.f32.mrf.mxu0
        %v397 = vadd.f32 %v345, %v396
        %398 = vmatmul.f32.gmra.mxu0 %v344
        %v399 = vpop.f32.mrf.mxu0
        %v400 = vadd.f32 %v345, %v399
        %401 = vdwg.mxu0
        %v402 = vmax.f32 %v364, 0.0
        %v403 = vmax.f32 %v367, 0.0
        %v404 = vmax.f32 %v370, 0.0
        %v405 = vmax.f32 %v373, 0.0
        %v406 = vmax.f32 %v376, 0.0
        %v407 = vmax.f32 %v379, 0.0
        %v408 = vmax.f32 %v382, 0.0
        %v409 = vmax.f32 %v385, 0.0
        %v410 = vmax.f32 %v388, 0.0
        %v411 = vmax.f32 %v391, 0.0
        %v412 = vmax.f32 %v394, 0.0
        %v413 = vmax.f32 %v397, 0.0
        %v414 = vmax.f32 %v400, 0.0
        %v415 = vperm.slane %v230, 0
        %416 = vmatpush.msra.mxu0 %v229
        %417 = vmatpush.msra.mxu0 %v228
        %418 = vmatpush.msra.mxu0 %v227
        %419 = vmatpush.msra.mxu0 %v226
        %420 = vmatpush.msra.mxu0 %v225
        %421 = vmatpush.msra.mxu0 %v224
        %422 = vmatpush.msra.mxu0 %v223
        %423 = vmatpush.msra.mxu0 %v222
        %424 = vmatpush.msra.mxu0 %v221
        %425 = vmatpush.msra.mxu0 %v220
        %426 = vmatpush.msra.mxu0 %v219
        %427 = vmatpush.msra.mxu0 %v218
        %428 = vmatpush.msra.mxu0 %v217
        %429 = vmatpush.msra.mxu0 %v216
        %430 = vmatpush.msra.mxu0 %v215
        %431 = vmatpush.msra.mxu0 %v214
        %432 = vmatmul.f32.gmra.mxu0 %v402
        %v433 = vpop.f32.mrf.mxu0
        %v434 = vadd.f32 %v415, %v433
        %435 = vmatmul.f32.gmra.mxu0 %v403
        %v436 = vpop.f32.mrf.mxu0
        %v437 = vadd.f32 %v415, %v436
        %438 = vmatmul.f32.gmra.mxu0 %v404
        %v439 = vpop.f32.mrf.mxu0
        %v440 = vadd.f32 %v415, %v439
        %441 = vmatmul.f32.gmra.mxu0 %v405
        %v442 = vpop.f32.mrf.mxu0
        %v443 = vadd.f32 %v415, %v442
        %444 = vmatmul.f32.gmra.mxu0 %v406
        %v445 = vpop.f32.mrf.mxu0
        %v446 = vadd.f32 %v415, %v445
        %447 = vmatmul.f32.gmra.mxu0 %v407
        %v448 = vpop.f32.mrf.mxu0
        %v449 = vadd.f32 %v415, %v448
        %450 = vmatmul.f32.gmra.mxu0 %v408
        %v451 = vpop.f32.mrf.mxu0
        %v452 = vadd.f32 %v415, %v451
        %453 = vmatmul.f32.gmra.mxu0 %v409
        %v454 = vpop.f32.mrf.mxu0
        %v455 = vadd.f32 %v415, %v454
        %456 = vmatmul.f32.gmra.mxu0 %v410
        %v457 = vpop.f32.mrf.mxu0
        %v458 = vadd.f32 %v415, %v457
        %459 = vmatmul.f32.gmra.mxu0 %v411
        %v460 = vpop.f32.mrf.mxu0
        %v461 = vadd.f32 %v415, %v460
        %462 = vmatmul.f32.gmra.mxu0 %v412
        %v463 = vpop.f32.mrf.mxu0
        %v464 = vadd.f32 %v415, %v463
        %465 = vmatmul.f32.gmra.mxu0 %v413
        %v466 = vpop.f32.mrf.mxu0
        %v467 = vadd.f32 %v415, %v466
        %468 = vmatmul.f32.gmra.mxu0 %v414
        %v469 = vpop.f32.mrf.mxu0
        %v470 = vadd.f32 %v415, %v469
        %471 = vdwg.mxu0
        %vm472 = vcmask 15360
        %473 = vst.msk [vmem:[%s162] sm:$0xff] %vm472, %v434
        %474 = vst.msk [vmem:[%s162 + $0x8] sm:$0xff] %vm472, %v437
        %475 = vst.msk [vmem:[%s162 + $0x10] sm:$0xff] %vm472, %v440
        %476 = vst.msk [vmem:[%s162 + $0x18] sm:$0xff] %vm472, %v443
        %477 = vst.msk [vmem:[%s162 + $0x20] sm:$0xff] %vm472, %v446
        %478 = vst.msk [vmem:[%s162 + $0x28] sm:$0xff] %vm472, %v449
        %479 = vst.msk [vmem:[%s162 + $0x30] sm:$0xff] %vm472, %v452
        %480 = vst.msk [vmem:[%s162 + $0x38] sm:$0xff] %vm472, %v455
        %481 = vst.msk [vmem:[%s162 + $0x40] sm:$0xff] %vm472, %v458
        %482 = vst.msk [vmem:[%s162 + $0x48] sm:$0xff] %vm472, %v461
        %483 = vst.msk [vmem:[%s162 + $0x50] sm:$0xff] %vm472, %v464
        %484 = vst.msk [vmem:[%s162 + $0x58] sm:$0xff] %vm472, %v467
        %485 = vst.msk [vmem:[%s162 + $0x60] sm:$0xff] %vm472, %v470
        %s486 = sand.u32 %s69, 1
        %s487 = sand.u32 %s69, 1
        %s488 = smul.addr %s487, 104
        %s489 = scalar_lea.vmem [#allocation4], %s488
        // Predicated region
        $region33: #{_tinynet_forward.1} parent=27 // pred_check
          %p490 = pneg %p79
        $region34: #{_tinynet_forward.1} parent=27 // pred_check_branch
          %492 = sbr.rel (%p490) target = $region36
        $region35: #{_tinynet_forward.1} parent=27 // pred_region
          %s493 = smul.u32 13, %s14
          %s494 = ssub.s32 25, %s493
          %p495 = scmp.lt.s32.totalorder %s494, 13
          %s496 = scalar_select %p495, %s494, 13
          %s497 = smul.u32 8, %s496
          %p498 = scmp.ne.s32.totalorder 0, %s497
          %s499 = smul.addr %s493, 8
          %s500 = scalar_lea.vmem %s2, %s499
          // Predicated region
          $region37: #{_tinynet_forward.1} parent=35 // pred_check
            %p501 = pneg %p498
          $region38: #{_tinynet_forward.1} parent=35 // pred_check_branch
            %503 = sbr.rel (%p501) target = $region40
          $region39: #{_tinynet_forward.1} parent=35 // pred_region
            // Predicated region
            $region41: #{_tinynet_forward.1} parent=39 // pred_check
              _
            $region42: #{_tinynet_forward.1} parent=39 // pred_check_branch
              %505 = sbr.rel (0) target = $region44
            $region43: #{_tinynet_forward.1} parent=39 // pred_region
              // Predicated region
              $region63: #{_tinynet_forward.1} parent=43 // pred_check
                _
              $region64: #{_tinynet_forward.1} parent=43 // pred_check_branch
                %580 = sbr.rel (0) target = $region66
              $region65: #{_tinynet_forward.1} parent=43 // pred_region
                %s581 = sdiv.u32.pop %s496, 13
                %s582 = srem.u32.pop %s496, 13
                // While loop
                $region67: #{_tinynet_forward.1} parent=65 // loop_pre_header
                  _
                $region68: #{_tinynet_forward.1} parent=65 // loop_header
                  %s584 = sphi 0, %s586
                  %p585 = scmp.ge.s32.totalorder %s584, %s581
                  %s589 = sphi 0, %s620
                  %s590 = sphi %s489, %s623
                  %s591 = sphi %s500, %s624
                $region69: #{_tinynet_forward.1} parent=65 // loop_header_branch
                  %588 = sbr.rel (%p585) target = $region73
                $region70: #{_tinynet_forward.1} parent=65 // loop_body
                  %v592 = vld [vmem:[%s590] sm:$0xff]
                  %593 = vst [vmem:[%s591] sm:$0xff] %v592
                  %v594 = vld [vmem:[%s590 + $0x8] sm:$0xff]
                  %595 = vst [vmem:[%s591 + $0x8] sm:$0xff] %v594
                  %v596 = vld [vmem:[%s590 + $0x10] sm:$0xff]
                  %597 = vst [vmem:[%s591 + $0x10] sm:$0xff] %v596
                  %v598 = vld [vmem:[%s590 + $0x18] sm:$0xff]
                  %599 = vst [vmem:[%s591 + $0x18] sm:$0xff] %v598
                  %v600 = vld [vmem:[%s590 + $0x20] sm:$0xff]
                  %601 = vst [vmem:[%s591 + $0x20] sm:$0xff] %v600
                  %v602 = vld [vmem:[%s590 + $0x28] sm:$0xff]
                  %603 = vst [vmem:[%s591 + $0x28] sm:$0xff] %v602
                  %v604 = vld [vmem:[%s590 + $0x30] sm:$0xff]
                  %605 = vst [vmem:[%s591 + $0x30] sm:$0xff] %v604
                  %v606 = vld [vmem:[%s590 + $0x38] sm:$0xff]
                  %607 = vst [vmem:[%s591 + $0x38] sm:$0xff] %v606
                  %v608 = vld [vmem:[%s590 + $0x40] sm:$0xff]
                  %609 = vst [vmem:[%s591 + $0x40] sm:$0xff] %v608
                  %v610 = vld [vmem:[%s590 + $0x48] sm:$0xff]
                  %611 = vst [vmem:[%s591 + $0x48] sm:$0xff] %v610
                  %v612 = vld [vmem:[%s590 + $0x50] sm:$0xff]
                  %613 = vst [vmem:[%s591 + $0x50] sm:$0xff] %v612
                  %v614 = vld [vmem:[%s590 + $0x58] sm:$0xff]
                  %615 = vst [vmem:[%s591 + $0x58] sm:$0xff] %v614
                  %v616 = vld [vmem:[%s590 + $0x60] sm:$0xff]
                  %617 = vst [vmem:[%s591 + $0x60] sm:$0xff] %v616
                  %s618 = sadd.s32 1, %s589
                  %p619 = scmp.ge.s32.totalorder %s618, %s581
                  %s620 = scalar_select %p619, 0, %s618
                  %s621 = smul.u32 %s620, 104
                  %s622 = smul.u32 %s620, 104
                  %s623 = scalar_lea.vmem %s489, %s621 [#allocation4]
                  %s624 = scalar_lea.vmem %s500, %s622
                $region71: #{_tinynet_forward.1} parent=65 // loop_footer
                  %s586 = sadd.s32 %s584, 1
                $region72: #{_tinynet_forward.1} parent=65 // loop_footer_branch
                  %583 = sbr.rel target = $region68
                $region73: #{_tinynet_forward.1} parent=65 // loop_exit
                  _
                %s625 = sdiv.u32.pop %s496, 13
                %s626 = srem.u32.pop %s496, 13
                %s627 = smul.u32 %s625, 13
                %s628 = smul.u32 8, %s627
                %s629 = scalar_lea.vmem %s489, %s628 [#allocation4]
                %s630 = smul.u32 8, %s627
                %s631 = scalar_lea.vmem %s500, %s630
                // While loop
                $region74: #{_tinynet_forward.1} parent=65 // loop_pre_header
                  _
                $region75: #{_tinynet_forward.1} parent=65 // loop_header
                  %s633 = sphi 0, %s635
                  %p634 = scmp.ge.s32.totalorder %s633, %s626
                  %s638 = sphi 0, %s645
                  %s639 = sphi %s629, %s648
                  %s640 = sphi %s631, %s649
                $region76: #{_tinynet_forward.1} parent=65 // loop_header_branch
                  %637 = sbr.rel (%p634) target = $region80
                $region77: #{_tinynet_forward.1} parent=65 // loop_body
                  %v641 = vld [vmem:[%s639] sm:$0xff]
                  %642 = vst [vmem:[%s640] sm:$0xff] %v641
                  %s643 = sadd.s32 1, %s638
                  %p644 = scmp.ge.s32.totalorder %s643, %s626
                  %s645 = scalar_select %p644, 0, %s643
                  %s646 = smul.u32 %s645, 8
                  %s647 = smul.u32 %s645, 8
                  %s648 = scalar_lea.vmem %s629, %s646 [#allocation4]
                  %s649 = scalar_lea.vmem %s631, %s647
                $region78: #{_tinynet_forward.1} parent=65 // loop_footer
                  %s635 = sadd.s32 %s633, 1
                $region79: #{_tinynet_forward.1} parent=65 // loop_footer_branch
                  %632 = sbr.rel target = $region75
                $region80: #{_tinynet_forward.1} parent=65 // loop_exit
                  _
              $region66: #{_tinynet_forward.1} parent=43 // pred_fallthru
                _
              // Predicated region
              $region81: #{_tinynet_forward.1} parent=43 // pred_check
                _
              $region82: #{_tinynet_forward.1} parent=43 // pred_check_branch
                %651 = sbr.rel target = $region84
              $region83: #{_tinynet_forward.1} parent=43 // pred_region
                _
              $region84: #{_tinynet_forward.1} parent=43 // pred_fallthru
                _
            $region44: #{_tinynet_forward.1} parent=39 // pred_fallthru
              _
            // Predicated region
            $region45: #{_tinynet_forward.1} parent=39 // pred_check
              _
            $region46: #{_tinynet_forward.1} parent=39 // pred_check_branch
              %507 = sbr.rel target = $region48
            $region47: #{_tinynet_forward.1} parent=39 // pred_region
              %s509 = ssub.s32 256, 1
              %s510 = sdiv.u32.pop %s496, 13
              %s511 = srem.u32.pop %s496, 13
              // While loop
              $region49: #{_tinynet_forward.1} parent=47 // loop_pre_header
                _
              $region50: #{_tinynet_forward.1} parent=47 // loop_header
                %s513 = sphi 0, %s515
                %p514 = scmp.ge.s32.totalorder %s513, %s510
                %s518 = sphi 0, %s549
                %s519 = sphi %s489, %s552
                %s520 = sphi %s500, %s553
              $region51: #{_tinynet_forward.1} parent=47 // loop_header_branch
                %517 = sbr.rel (%p514) target = $region55
              $region52: #{_tinynet_forward.1} parent=47 // loop_body
                %v521 = vld [vmem:[%s519] sm:%s509]
                %522 = vst [vmem:[%s520] sm:%s509] %v521
                %v523 = vld [vmem:[%s519 + $0x8] sm:%s509]
                %524 = vst [vmem:[%s520 + $0x8] sm:%s509] %v523
                %v525 = vld [vmem:[%s519 + $0x10] sm:%s509]
                %526 = vst [vmem:[%s520 + $0x10] sm:%s509] %v525
                %v527 = vld [vmem:[%s519 + $0x18] sm:%s509]
                %528 = vst [vmem:[%s520 + $0x18] sm:%s509] %v527
                %v529 = vld [vmem:[%s519 + $0x20] sm:%s509]
                %530 = vst [vmem:[%s520 + $0x20] sm:%s509] %v529
                %v531 = vld [vmem:[%s519 + $0x28] sm:%s509]
                %532 = vst [vmem:[%s520 + $0x28] sm:%s509] %v531
                %v533 = vld [vmem:[%s519 + $0x30] sm:%s509]
                %534 = vst [vmem:[%s520 + $0x30] sm:%s509] %v533
                %v535 = vld [vmem:[%s519 + $0x38] sm:%s509]
                %536 = vst [vmem:[%s520 + $0x38] sm:%s509] %v535
                %v537 = vld [vmem:[%s519 + $0x40] sm:%s509]
                %538 = vst [vmem:[%s520 + $0x40] sm:%s509] %v537
                %v539 = vld [vmem:[%s519 + $0x48] sm:%s509]
                %540 = vst [vmem:[%s520 + $0x48] sm:%s509] %v539
                %v541 = vld [vmem:[%s519 + $0x50] sm:%s509]
                %542 = vst [vmem:[%s520 + $0x50] sm:%s509] %v541
                %v543 = vld [vmem:[%s519 + $0x58] sm:%s509]
                %544 = vst [vmem:[%s520 + $0x58] sm:%s509] %v543
                %v545 = vld [vmem:[%s519 + $0x60] sm:%s509]
                %546 = vst [vmem:[%s520 + $0x60] sm:%s509] %v545
                %s547 = sadd.s32 1, %s518
                %p548 = scmp.ge.s32.totalorder %s547, %s510
                %s549 = scalar_select %p548, 0, %s547
                %s550 = smul.u32 %s549, 104
                %s551 = smul.u32 %s549, 104
                %s552 = scalar_lea.vmem %s489, %s550 [#allocation4]
                %s553 = scalar_lea.vmem %s500, %s551
              $region53: #{_tinynet_forward.1} parent=47 // loop_footer
                %s515 = sadd.s32 %s513, 1
              $region54: #{_tinynet_forward.1} parent=47 // loop_footer_branch
                %512 = sbr.rel target = $region50
              $region55: #{_tinynet_forward.1} parent=47 // loop_exit
                _
              %s554 = sdiv.u32.pop %s496, 13
              %s555 = srem.u32.pop %s496, 13
              %s556 = smul.u32 %s554, 13
              %s557 = smul.u32 8, %s556
              %s558 = scalar_lea.vmem %s489, %s557 [#allocation4]
              %s559 = smul.u32 8, %s556
              %s560 = scalar_lea.vmem %s500, %s559
              // While loop
              $region56: #{_tinynet_forward.1} parent=47 // loop_pre_header
                _
              $region57: #{_tinynet_forward.1} parent=47 // loop_header
                %s562 = sphi 0, %s564
                %p563 = scmp.ge.s32.totalorder %s562, %s555
                %s567 = sphi 0, %s574
                %s568 = sphi %s558, %s577
                %s569 = sphi %s560, %s578
              $region58: #{_tinynet_forward.1} parent=47 // loop_header_branch
                %566 = sbr.rel (%p563) target = $region62
              $region59: #{_tinynet_forward.1} parent=47 // loop_body
                %v570 = vld [vmem:[%s568] sm:%s509]
                %571 = vst [vmem:[%s569] sm:%s509] %v570
                %s572 = sadd.s32 1, %s567
                %p573 = scmp.ge.s32.totalorder %s572, %s555
                %s574 = scalar_select %p573, 0, %s572
                %s575 = smul.u32 %s574, 8
                %s576 = smul.u32 %s574, 8
                %s577 = scalar_lea.vmem %s558, %s575 [#allocation4]
                %s578 = scalar_lea.vmem %s560, %s576
              $region60: #{_tinynet_forward.1} parent=47 // loop_footer
                %s564 = sadd.s32 %s562, 1
              $region61: #{_tinynet_forward.1} parent=47 // loop_footer_branch
                %561 = sbr.rel target = $region57
              $region62: #{_tinynet_forward.1} parent=47 // loop_exit
                _
            $region48: #{_tinynet_forward.1} parent=39 // pred_fallthru
              _
          $region40: #{_tinynet_forward.1} parent=35 // pred_fallthru
            _
          %652 = vnop
        $region36: #{_tinynet_forward.1} parent=27 // pred_fallthru
          _
      $region28: #{_tinynet_forward.1} parent=5 // pred_fallthru
        _
      %p653 = scmp.le.s32.totalorder 2, %s9
      // Predicated region
      $region85: #{_tinynet_forward.1} parent=5 // pred_check
        %p654 = pneg %p653
      $region86: #{_tinynet_forward.1} parent=5 // pred_check_branch
        %656 = sbr.rel (%p654) target = $region88
      $region87: #{_tinynet_forward.1} parent=5 // pred_region
        %s657 = ssub.s32 %s9, 2
        // Predicated region
        $region89: #{_tinynet_forward.1} parent=87 // pred_check
          %p658 = pneg %p85
        $region90: #{_tinynet_forward.1} parent=87 // pred_check_branch
          %660 = sbr.rel (%p658) target = $region92
        $region91: #{_tinynet_forward.1} parent=87 // pred_region
          %s661 = sand.u32 %s70, 1
          %s662 = sand.u32 %s70, 1
          %s663 = smul.addr %s662, 104
          %s664 = scalar_lea.vmem [#allocation4], %s663
        $region92: #{_tinynet_forward.1} parent=87 // pred_fallthru
          _
      $region88: #{_tinynet_forward.1} parent=5 // pred_fallthru
        _
    $region6: #{_tinynet_forward.1} parent=1 // loop_footer
      %s13 = sadd.s32 1, %s9
    $region7: #{_tinynet_forward.1} parent=1 // loop_footer_branch
      %8 = sbr.rel target = $region3
    $region8: #{_tinynet_forward.1} parent=1 // loop_exit
      _
    %665 = vsyncpa [#allocation3], 1
    %s666 = scalar_lea.sflag [#allocation3], 1
    %667 = vsyncpa %s666, 1

</llo_original>
